<compile_context>
chip_gen: v7x
topology: tpu7x:2x2x1
jax: 0.10.0
libtpu: 0.0.40
codegen_flags: <defaults>
</compile_context>

<pallas_src>
import jax
import jax.numpy as jnp
from jax.experimental import pallas as pl
from jax.experimental.pallas import tpu as pltpu


def _round_up(n, m):
    return (n + m - 1) // m * m


def _fc_kernel(x_ref, w_ref, b_ref, o_ref):
    # x_ref: [TM, Cr] (native dtype)  w_ref: [Cr, Fr]  b_ref: [1, Fr]  o_ref: [TM, Fr] f32
    # Rows of the ragged last tile beyond the real row count contain garbage;
    # the corresponding output rows are masked by Pallas and never written.
    acc = jnp.dot(x_ref[...], w_ref[...], preferred_element_type=jnp.float32)
    o_ref[...] = (acc + b_ref[...]).astype(o_ref.dtype)


def _vmem_budget():
    """Returns (vmem ceiling for the pipeline, target x-tile bytes) per generation."""
    try:
        cap = int(pltpu.get_tpu_info().vmem_capacity_bytes)
    except Exception:  # interpret mode / older runtimes: assume the small (v7x) VMEM
        cap = 64 * 1024 * 1024
    if cap <= 64 * 1024 * 1024:                      # v7x-class: 64 MiB per TensorCore
        return 48 * 1024 * 1024, 8 * 1024 * 1024
    return 96 * 1024 * 1024, 16 * 1024 * 1024        # v5e / v6e: 128 MiB physical VMEM


def bbox_prediction_forward(x, w, b, num_boxes):
    """fc(x).view(-1, num_boxes, 4).

    x: [N, C] activations (N = batch * num_boxes already flattened),
    w: [C, 4] (transpose of torch's [4, C] weight), b: [4].
    Returns float32 [N // num_boxes, num_boxes, 4].
    """
    N, C = x.shape
    assert N % num_boxes == 0, "rows must be divisible by num_boxes (torch .view semantics)"

    itemsize = jnp.dtype(x.dtype).itemsize

    # --- Lane-dense row packing: largest power-of-two k <= 32 that divides N,
    #     keeps the block-diagonal weight tiny, and keeps >= 8 packed rows. ---
    k = 32
    while k > 1 and not (N % k == 0
                         and 16 * k * k * C <= (2 << 20)
                         and k <= max(1, N // 8)):
        k //= 2
    Nr, Cr, Fr = N // k, C * k, 4 * k
    xr = x.reshape(Nr, Cr)                           # free: contiguous row-major view
    wr = jnp.kron(jnp.eye(k, dtype=w.dtype), w)      # [Cr, Fr] block-diagonal, tiny constant
    br = jnp.tile(b.reshape(1, 4), (1, k)).astype(jnp.float32)   # [1, Fr]

    # --- Row-tile size: sized by bytes, not rows. ---
    vmem_ceiling, x_tile_target = _vmem_budget()
    rows_target = max(x_tile_target // max(Cr * itemsize, 1), 8)
    tm = max(8, (rows_target // 8) * 8)
    tm = min(tm, _round_up(pl.cdiv(Nr, 4), 8))       # keep >= ~4 grid steps (v7x megacore)
    if tm >= Nr:
        tm = Nr                                      # single exact-fit tile (full-dim block)
    grid = (pl.cdiv(Nr, tm),)

    # --- VMEM limit: actual double-buffered needs + headroom, per-gen ceiling. ---
    needed = (2 * tm * Cr * itemsize                 # double-buffered x tiles
              + 2 * tm * Fr * 4                      # double-buffered output tiles
              + Cr * Fr * 4 + Fr * 4                 # resident weight + bias
              + (2 << 20))                           # headroom
    vmem_limit = int(min(max(2 * needed, 16 * 1024 * 1024), vmem_ceiling))

    cost = pl.CostEstimate(
        flops=2 * Nr * Cr * Fr,                      # actual MXU work (incl. block-diag zeros)
        transcendentals=0,
        bytes_accessed=N * C * itemsize + N * 4 * 4 + Cr * Fr * 4 + Fr * 4,
    )

    out = pl.pallas_call(
        _fc_kernel,
        out_shape=jax.ShapeDtypeStruct((Nr, Fr), jnp.float32),
        grid=grid,
        in_specs=[
            pl.BlockSpec((tm, Cr), lambda i: (i, 0)),    # x: streamed row tiles
            pl.BlockSpec((Cr, Fr), lambda i: (0, 0)),    # W: resident across the grid
            pl.BlockSpec((1, Fr), lambda i: (0, 0)),     # b: resident across the grid
        ],
        # With k = 32 (N % 32 == 0) Fr == 128: fully lane-dense, unmasked stores.
        # TODO(synk): for N % 32 != 0 (Fr < 128) an in-kernel reshape of the
        # (tm, Fr) tile to (tm*Fr//128, 128) would make the store lane-dense too.
        out_specs=pl.BlockSpec((tm, Fr), lambda i: (i, 0)),
        compiler_params=pltpu.CompilerParams(
            dimension_semantics=("parallel",),           # megacore sharding on v7x
            vmem_limit_bytes=vmem_limit,
        ),
        cost_estimate=cost,
    )(xr, wr, br)

    # Row-major layout of (Nr, Fr) is byte-identical to (N, 4): the view is free.
    return out.reshape(-1, num_boxes, 4)


if __name__ == "__main__":
    key = jax.random.PRNGKey(0)
    k_x, k_w, k_b = jax.random.split(key, 3)

    input_channels = 32
    batch = 2
    num_boxes = 8
    N = batch * num_boxes   # rows fed to the Linear (already flattened, as in torch)

    x = jax.random.normal(k_x, (N, input_channels), dtype=jnp.float32)
    bound = 1.0 / (input_channels ** 0.5)               # nn.Linear default init range
    w = jax.random.uniform(k_w, (input_channels, 4), jnp.float32, -bound, bound)
    b = jax.random.uniform(k_b, (4,), jnp.float32, -bound, bound)

    out = bbox_prediction_forward(x, w, b, num_boxes)
    out = jax.block_until_ready(out)
    assert out.shape == (batch, num_boxes, 4), out.shape

    ref = (x @ w + b).reshape(-1, num_boxes, 4)
    err = float(jnp.max(jnp.abs(out - ref)))
    assert jnp.allclose(out, ref, atol=1e-2, rtol=1e-2), f"max abs err {err}"

    print("KERNEL_OK")
</pallas_src>

<mosaic_0001>
module attributes {stable_mosaic.version = 11 : i64} {
  func.func @_fc_kernel(%arg0: i32, %arg1: memref<8x64xf32, #tpu.memory_space<vmem>>, %arg2: memref<64x8xf32, #tpu.memory_space<vmem>>, %arg3: memref<1x8xf32, #tpu.memory_space<vmem>>, %arg4: memref<8x8xf32, #tpu.memory_space<vmem>>) attributes {dimension_semantics = [#tpu.dimension_semantics<parallel>], iteration_bounds = array<i64: 1>, scalar_prefetch = 0 : i64, scratch_operands = 0 : i64, tpu.core_type = #tpu.core_type<tc>, window_params = [{transform_indices = @transform_0, window_bounds = array<i64: 8, 64>}, {pipeline_mode = #tpu.pipeline_mode<synchronous>, transform_indices = @transform_1, window_bounds = array<i64: 64, 8>}, {pipeline_mode = #tpu.pipeline_mode<synchronous>, transform_indices = @transform_2, window_bounds = array<i64: 1, 8>}, {transform_indices = @transform_3, window_bounds = array<i64: 8, 8>}]} {
    %c0 = arith.constant 0 : index
    %c0_0 = arith.constant 0 : index
    %0 = vector.load %arg1[%c0, %c0_0] : memref<8x64xf32, #tpu.memory_space<vmem>>, vector<8x64xf32>
    %c0_1 = arith.constant 0 : index
    %c0_2 = arith.constant 0 : index
    %1 = vector.load %arg2[%c0_1, %c0_2] : memref<64x8xf32, #tpu.memory_space<vmem>>, vector<64x8xf32>
    %cst = arith.constant dense<0.000000e+00> : vector<8x8xf32>
    %2 = tpu.matmul %0, %1, %cst {dimension_numbers = #tpu.dot_dimension_numbers<[1], [0], [0], [1], [0, 0, 1, 1], [], []>} : vector<8x64xf32>, vector<64x8xf32>, vector<8x8xf32> -> vector<8x8xf32>
    %c0_3 = arith.constant 0 : index
    %c0_4 = arith.constant 0 : index
    %3 = vector.load %arg3[%c0_3, %c0_4] : memref<1x8xf32, #tpu.memory_space<vmem>>, vector<1x8xf32>
    %4 = vector.broadcast %3 : vector<1x8xf32> to vector<8x8xf32>
    %5 = arith.addf %2, %4 : vector<8x8xf32>
    %c0_5 = arith.constant 0 : index
    %c0_6 = arith.constant 0 : index
    %6 = vector.load %arg4[%c0_5, %c0_6] : memref<8x8xf32, #tpu.memory_space<vmem>>, vector<8x8xf32>
    tpu.vector_store %arg4[%c0_5, %c0_6], %5 {strides = array<i32>} : memref<8x8xf32, #tpu.memory_space<vmem>>, vector<8x8xf32>,
    return
  }
  func.func @transform_0(%arg0: i32) -> (i32, i32) {
    %c0_i32 = arith.constant 0 : i32
    %c0_i32_0 = arith.constant 0 : i32
    return %arg0, %c0_i32 : i32, i32
  }
  func.func @transform_1(%arg0: i32) -> (i32, i32) {
    %c0_i32 = arith.constant 0 : i32
    %c0_i32_0 = arith.constant 0 : i32
    %c0_i32_1 = arith.constant 0 : i32
    return %c0_i32, %c0_i32_0 : i32, i32
  }
  func.func @transform_2(%arg0: i32) -> (i32, i32) {
    %c0_i32 = arith.constant 0 : i32
    %c0_i32_0 = arith.constant 0 : i32
    %c0_i32_1 = arith.constant 0 : i32
    return %c0_i32, %c0_i32_0 : i32, i32
  }
  func.func @transform_3(%arg0: i32) -> (i32, i32) {
    %c0_i32 = arith.constant 0 : i32
    %c0_i32_0 = arith.constant 0 : i32
    return %arg0, %c0_i32 : i32, i32
  }
}

</mosaic_0001>

<llo_original>
// kernel: tpu_custom_call.1
$region0: #{tpu_custom_call.1}
  #allocation0 [shape = 'u32[]', space=smem, size = 0x4, offset = 0x4, fixed_abs, tag = 'smem constant byte address 0x4 - core index']
  #allocation1 [shape = 'u32[144,128]{1,0:T(1,128)}', space=vmem, size = 0x12000, scoped, tag = 'internal scratch']
  %s0 = inlined_call_operand.vmem [shape: f32[8,64], index: 0, kind: input, shape index: {}]
  %s1 = inlined_call_operand.vmem [shape: f32[64,8], index: 1, kind: input, shape index: {}]
  %s2 = inlined_call_operand.vmem [shape: f32[1,8], index: 2, kind: input, shape index: {}]
  %s3 = inlined_call_operand.hbm [shape: f32[8,8], index: 3, kind: output, shape index: {}]
  %s4 = sld [smem:[#allocation0]]
  $region22: #{tpu_custom_call.1} parent=0
    _
  %s6 = ssub.s32 1, %s4
  %s7 = scalar_select 0, %s6, %s4
  $region1: #{tpu_custom_call.1} parent=0
    #allocation2 [shape = 'u8[4096]{0}', space=vmem, size = 0x1000, scoped, tag = 'output window, operand 0, single buffered']
    #allocation3 [shape = 's32[1]{0}', space=sflag, size = 0x4, scoped, tag = 'scoped memory for tpu_custom_call.1']
    %8 = vsyncpa [#allocation3], 0
    // Predicated region
    $region2: #{tpu_custom_call.1} parent=1 // pred_check
      _
    $region3: #{tpu_custom_call.1} parent=1 // pred_check_branch
      %10 = sbr.rel (0) target = $region5
    $region4: #{tpu_custom_call.1} parent=1 // pred_region
      _
    $region5: #{tpu_custom_call.1} parent=1 // pred_fallthru
      _
    // Predicated region
    $region6: #{tpu_custom_call.1} parent=1 // pred_check
      _
    $region7: #{tpu_custom_call.1} parent=1 // pred_check_branch
      %12 = sbr.rel (0) target = $region9
    $region8: #{tpu_custom_call.1} parent=1 // pred_region
      _
    $region9: #{tpu_custom_call.1} parent=1 // pred_fallthru
      _
    // Predicated region
    $region10: #{tpu_custom_call.1} parent=1 // pred_check
      _
    $region11: #{tpu_custom_call.1} parent=1 // pred_check_branch
      %14 = sbr.rel (0) target = $region13
    $region12: #{tpu_custom_call.1} parent=1 // pred_region
      _
    $region13: #{tpu_custom_call.1} parent=1 // pred_fallthru
      _
    %v15 = vld [vmem:[%s0] sm:$0xff]
    %v16 = vld [vmem:[%s1] sm:$0xff]
    %v17 = vld [vmem:[%s1 + $0x8] sm:$0xff]
    %v18 = vld [vmem:[%s1 + $0x10] sm:$0xff]
    %v19 = vld [vmem:[%s1 + $0x18] sm:$0xff]
    %v20 = vld [vmem:[%s1 + $0x20] sm:$0xff]
    %v21 = vld [vmem:[%s1 + $0x28] sm:$0xff]
    %v22 = vld [vmem:[%s1 + $0x30] sm:$0xff]
    %v23 = vld [vmem:[%s1 + $0x38] sm:$0xff]
    %v24 = vld [vmem:[%s2] sm:$0x1]
    %v26 = vlaneseq
    %v27 = vshrl.u32 %v26, 7
    %v28 = vsub.s32 0, %v27
    %v29 = vrot.slane %v24, %v28
    %vm31 = vcmask 523264
    %v33 = vsel %vm31, %v15, 0
    %35 = vmatprep.subr.mxu0 0.0
    %36 = vmatpush1.msra.mxu0 %v16
    %37 = vmatprep.subr.mxu0 0.0
    %38 = vmatpush1.msra.mxu0 %v17
    %39 = vmatprep.subr.mxu0 0.0
    %40 = vmatpush1.msra.mxu0 %v18
    %41 = vmatprep.subr.mxu0 0.0
    %42 = vmatpush1.msra.mxu0 %v19
    %43 = vmatprep.subr.mxu0 0.0
    %44 = vmatpush1.msra.mxu0 %v20
    %45 = vmatprep.subr.mxu0 0.0
    %46 = vmatpush1.msra.mxu0 %v21
    %47 = vmatprep.subr.mxu0 0.0
    %48 = vmatpush1.msra.mxu0 %v22
    %49 = vmatprep.subr.mxu0 0.0
    %50 = vmatpush1.msra.mxu0 %v23
    %51 = vmatprep.subr.mxu0 0.0
    %52 = vmatpush1.msra.mxu0 0.0
    %53 = vmatprep.subr.mxu0 0.0
    %54 = vmatpush1.msra.mxu0 0.0
    %55 = vmatprep.subr.mxu0 0.0
    %56 = vmatpush1.msra.mxu0 0.0
    %57 = vmatprep.subr.mxu0 0.0
    %58 = vmatpush1.msra.mxu0 0.0
    %59 = vmatprep.subr.mxu0 0.0
    %60 = vmatpush1.msra.mxu0 0.0
    %61 = vmatprep.subr.mxu0 0.0
    %62 = vmatpush1.msra.mxu0 0.0
    %63 = vmatprep.subr.mxu0 0.0
    %64 = vmatpush1.msra.mxu0 0.0
    %65 = vmatprep.subr.mxu0 0.0
    %66 = vmatpush1.msra.mxu0 0.0
    %67 = vmatprep.subr.mxu0 0.0
    %68 = vmatpush1.msra.mxu0 0.0
    %69 = vmatprep.subr.mxu0 0.0
    %70 = vmatpush1.msra.mxu0 0.0
    %71 = vmatprep.subr.mxu0 0.0
    %72 = vmatpush1.msra.mxu0 0.0
    %73 = vmatprep.subr.mxu0 0.0
    %74 = vmatpush1.msra.mxu0 0.0
    %75 = vmatprep.subr.mxu0 0.0
    %76 = vmatpush1.msra.mxu0 0.0
    %77 = vmatprep.subr.mxu0 0.0
    %78 = vmatpush1.msra.mxu0 0.0
    %79 = vmatprep.subr.mxu0 0.0
    %80 = vmatpush1.msra.mxu0 0.0
    %81 = vmatprep.subr.mxu0 0.0
    %82 = vmatpush1.msra.mxu0 0.0
    %83 = vmatprep.subr.mxu0 0.0
    %84 = vmatpush1.msra.mxu0 0.0
    %85 = vmatprep.subr.mxu0 0.0
    %86 = vmatpush1.msra.mxu0 0.0
    %87 = vmatprep.subr.mxu0 0.0
    %88 = vmatpush1.msra.mxu0 0.0
    %89 = vmatprep.subr.mxu0 0.0
    %90 = vmatpush1.msra.mxu0 0.0
    %91 = vmatprep.subr.mxu0 0.0
    %92 = vmatpush1.msra.mxu0 0.0
    %93 = vmatprep.subr.mxu0 0.0
    %94 = vmatpush1.msra.mxu0 0.0
    %95 = vmatprep.subr.mxu0 0.0
    %96 = vmatpush1.msra.mxu0 0.0
    %97 = vmatprep.subr.mxu0 0.0
    %98 = vmatpush1.msra.mxu0 0.0
    %99 = vmatprep.mubr.f32.mxu0 0.0
    %100 = vmatmul.mubr.f32.gmra.mrb[0].mxu0 %v33
    %v101 = vpop.f32.mrb[0].mxu0
    %v102 = vadd.f32 %v29, %v101
    %v103 = vpop.f32.mrb[0].mxu0
    %104 = vdwg.mxu0
    %vm105 = vcmask 64512
    %106 = vst.msk [vmem:[#allocation2] sm:$0xff] %vm105, %v102
    // Predicated region
    $region14: #{tpu_custom_call.1} parent=1 // pred_check
      _
    $region15: #{tpu_custom_call.1} parent=1 // pred_check_branch
      %108 = sbr.rel (0) target = $region17
    $region16: #{tpu_custom_call.1} parent=1 // pred_region
      %s110 = ssub.s32 128, 128
      %111 = vsyncadd [#allocation3], %s110
      %s113 = sshll.u32 [#allocation2], 4
      %s114 = int_to_ptr.vmem [resolvable:$true] %s113
      %116 = dma.vmem_to_hbm [thread:$0]  %s114, 128, %s3, [#allocation3]
    $region17: #{tpu_custom_call.1} parent=1 // pred_fallthru
      _
    // Predicated region
    $region18: #{tpu_custom_call.1} parent=1 // pred_check
      _
    $region19: #{tpu_custom_call.1} parent=1 // pred_check_branch
      %118 = sbr.rel (0) target = $region21
    $region20: #{tpu_custom_call.1} parent=1 // pred_region
      %119 = dma.done [#allocation3], 128
    $region21: #{tpu_custom_call.1} parent=1 // pred_fallthru
      _
    %120 = vsyncpa [#allocation3], 1

</llo_original>
